<compile_context>
chip_gen: v5e
topology: v5e:2x2
jax: 0.10.0
libtpu: 0.0.40
codegen_flags: <defaults>
</compile_context>

<pallas_src>
import functools

import jax
import jax.numpy as jnp
from jax.experimental import pallas as pl
from jax.experimental.pallas import tpu as pltpu

_PLANES = 5  # [gt_x, gt_y, w(=joint_weights*conf), proj_x, proj_y]


def _color_term_kernel(slab_ref, out_ref, *, rho2):
    # slab_ref: (5, Jt, TB) VMEM.  Joints on sublanes, batch instances on lanes.
    #           Padded joints/lanes have w == 0 so they contribute nothing.
    # out_ref:  (1, TB) VMEM, per-instance loss (lane-dense store).
    gt_x = slab_ref[0]          # (Jt, TB)
    gt_y = slab_ref[1]
    w = slab_ref[2]             # joint_weights * confidence (unnormalized)
    pr_x = slab_ref[3]
    pr_y = slab_ref[4]

    # Normalization denominator, deferred to the epilogue.
    s1 = jnp.sum(w, axis=-2, keepdims=True)          # (1, TB)  sublane reduce

    dx = gt_x - pr_x
    dy = gt_y - pr_y
    sqx = dx * dx
    sqy = dy * dy

    # GMoF: rho^2 * sq / (sq + rho^2).  EUP approx reciprocal + one NR step.
    dnx = sqx + rho2
    rx = pl.reciprocal(dnx, approx=True)
    rx = rx * (2.0 - dnx * rx)
    dny = sqy + rho2
    ry = pl.reciprocal(dny, approx=True)
    ry = ry * (2.0 - dny * ry)
    gm = rho2 * (sqx * rx + sqy * ry)                 # (Jt, TB)

    s2 = jnp.sum((w * w) * gm, axis=-2, keepdims=True)  # (1, TB)

    # loss = S2 / S1^2  == sum((w/S1)^2 * gmof)
    out_ref[...] = s2 / (s1 * s1)


def color_term_loss(keypoint_data, projected_joints, joint_weights, rho=100.0):
    """Pallas implementation of ColorTerm.forward.

    Accepts unbatched inputs ((J,3), (J,2), (J,)) exactly like the PyTorch module,
    or batched inputs ((B,J,3), (B,J,2), (J,) or (B,J)) returning (B,) losses.
    """
    keypoint_data = jnp.asarray(keypoint_data, jnp.float32)
    projected_joints = jnp.asarray(projected_joints, jnp.float32)
    joint_weights = jnp.asarray(joint_weights, jnp.float32)

    unbatched = keypoint_data.ndim == 2
    if unbatched:
        keypoint_data = keypoint_data[None]
        projected_joints = projected_joints[None]
    B, J, _ = keypoint_data.shape

    # Fold joint_weights * conf during packing (1-D weights broadcast for free here;
    # no full extra plane is ever materialized).
    w = joint_weights * keypoint_data[..., 2]                     # (B, J)

    # Pack into one slab: (5, J, B) — joints on sublanes, batch on lanes.
    slab = jnp.stack(
        [
            keypoint_data[..., 0].T,
            keypoint_data[..., 1].T,
            w.T,
            projected_joints[..., 0].T,
            projected_joints[..., 1].T,
        ],
        axis=0,
    )

    # Pad: joints to a sublane multiple (8), batch to a lane multiple (128).
    Jp = max(8, ((J + 7) // 8) * 8)
    Bp = max(128, ((B + 127) // 128) * 128)
    slab = jnp.pad(slab, ((0, 0), (0, Jp - J), (0, Bp - B)))

    # Tile width over the batch/lane axis.
    vmem_budget = 12 * 1024 * 1024                                # double-buffered input
    tb_vmem = max(128, (vmem_budget // (2 * _PLANES * Jp * 4)) // 128 * 128)
    tb_split = max(128, ((Bp + 255) // 256) * 128)                # >=2 steps when Bp>=256
    TB = min(2048, tb_vmem, tb_split, Bp)
    grid = (pl.cdiv(Bp, TB),)

    cost = pl.CostEstimate(
        flops=20 * B * J,
        transcendentals=2 * B * J,
        bytes_accessed=int(slab.size) * 4 + Bp * 4,
    )

    out = pl.pallas_call(
        functools.partial(_color_term_kernel, rho2=float(rho) * float(rho)),
        out_shape=jax.ShapeDtypeStruct((1, Bp), jnp.float32),
        grid=grid,
        in_specs=[pl.BlockSpec((_PLANES, Jp, TB), lambda i: (0, 0, i))],
        out_specs=pl.BlockSpec((1, TB), lambda i: (0, i)),
        compiler_params=pltpu.CompilerParams(
            dimension_semantics=("parallel",)),
        cost_estimate=cost,
    )(slab)

    losses = out[0, :B]
    return losses[0] if unbatched else losses


def color_term_loss_ref(keypoint_data, projected_joints, joint_weights, rho=100.0):
    """Pure-JAX reference mirroring the PyTorch forward (supports a batch axis)."""
    gt = keypoint_data[..., :2]
    conf = keypoint_data[..., 2]
    w = joint_weights * conf
    w = w / jnp.sum(w, axis=-1, keepdims=True)
    w = w[..., None]
    d = gt - projected_joints
    sq = d * d
    rho2 = rho * rho
    gmof = rho2 * (sq / (sq + rho2))
    return jnp.sum(w * w * gmof, axis=(-2, -1))


if __name__ == "__main__":
    key = jax.random.PRNGKey(0)
    rho = 100.0

    def make_inputs(k, B, J):
        k1, k2, k3 = jax.random.split(k, 3)
        xy = jax.random.uniform(k1, (B, J, 2), jnp.float32, minval=0.0, maxval=640.0)
        conf = jax.random.uniform(k2, (B, J, 1), jnp.float32, minval=0.1, maxval=1.0)
        kd = jnp.concatenate([xy, conf], axis=-1)
        pj = xy + jax.random.normal(k3, (B, J, 2), jnp.float32) * 25.0
        return kd, pj

    # Small batched case (single grid step).
    k_a, k_b = jax.random.split(key)
    kd, pj = make_inputs(k_a, B=4, J=8)
    jw = jnp.ones((8,), jnp.float32)
    loss_b = color_term_loss(kd, pj, jw, rho=rho)
    jax.block_until_ready(loss_b)
    ref_b = color_term_loss_ref(kd, pj, jw, rho=rho)
    assert jnp.allclose(loss_b, ref_b, rtol=1e-5, atol=1e-5), (loss_b, ref_b)

    # Unbatched path (matches the PyTorch module signature exactly).
    loss_1 = color_term_loss(kd[0], pj[0], jw, rho=rho)
    jax.block_until_ready(loss_1)
    ref_1 = color_term_loss_ref(kd[0], pj[0], jw, rho=rho)
    assert jnp.allclose(loss_1, ref_1, rtol=1e-5, atol=1e-5), (loss_1, ref_1)

    # Larger batch with realistic J=25: exercises multi-step grid + batch padding.
    kd2, pj2 = make_inputs(k_b, B=260, J=25)
    jw2 = jnp.ones((25,), jnp.float32)
    loss_b2 = color_term_loss(kd2, pj2, jw2, rho=rho)
    jax.block_until_ready(loss_b2)
    ref_b2 = color_term_loss_ref(kd2, pj2, jw2, rho=rho)
    assert jnp.allclose(loss_b2, ref_b2, rtol=1e-5, atol=1e-5)

    # TODO(synk): modelRender / renderMesh (OpenGL rendering + cv2.imwrite) has no Pallas
    # equivalent; only the forward() loss path is implemented.
    print("KERNEL_OK")
</pallas_src>

<mosaic_0001>
module attributes {stable_mosaic.version = 11 : i64} {
  func.func @_color_term_kernel(%arg0: i32, %arg1: memref<5x8x128xf32, #tpu.memory_space<vmem>>, %arg2: memref<1x128xf32, #tpu.memory_space<vmem>>) attributes {dimension_semantics = [#tpu.dimension_semantics<parallel>], iteration_bounds = array<i64: 1>, scalar_prefetch = 0 : i64, scratch_operands = 0 : i64, tpu.core_type = #tpu.core_type<tc>, window_params = [{transform_indices = @transform_0, window_bounds = array<i64: 5, 8, 128>}, {transform_indices = @transform_1, window_bounds = array<i64: 1, 128>}]} {
    %c0 = arith.constant 0 : index
    %c0_0 = arith.constant 0 : index
    %c0_1 = arith.constant 0 : index
    %0 = vector.load %arg1[%c0, %c0_0, %c0_1] : memref<5x8x128xf32, #tpu.memory_space<vmem>>, vector<1x8x128xf32>
    %1 = vector.shape_cast %0 : vector<1x8x128xf32> to vector<8x128xf32>
    %c1 = arith.constant 1 : index
    %c0_2 = arith.constant 0 : index
    %c0_3 = arith.constant 0 : index
    %2 = vector.load %arg1[%c1, %c0_2, %c0_3] : memref<5x8x128xf32, #tpu.memory_space<vmem>>, vector<1x8x128xf32>
    %3 = vector.shape_cast %2 : vector<1x8x128xf32> to vector<8x128xf32>
    %c2 = arith.constant 2 : index
    %c0_4 = arith.constant 0 : index
    %c0_5 = arith.constant 0 : index
    %4 = vector.load %arg1[%c2, %c0_4, %c0_5] : memref<5x8x128xf32, #tpu.memory_space<vmem>>, vector<1x8x128xf32>
    %5 = vector.shape_cast %4 : vector<1x8x128xf32> to vector<8x128xf32>
    %c3 = arith.constant 3 : index
    %c0_6 = arith.constant 0 : index
    %c0_7 = arith.constant 0 : index
    %6 = vector.load %arg1[%c3, %c0_6, %c0_7] : memref<5x8x128xf32, #tpu.memory_space<vmem>>, vector<1x8x128xf32>
    %7 = vector.shape_cast %6 : vector<1x8x128xf32> to vector<8x128xf32>
    %c4 = arith.constant 4 : index
    %c0_8 = arith.constant 0 : index
    %c0_9 = arith.constant 0 : index
    %8 = vector.load %arg1[%c4, %c0_8, %c0_9] : memref<5x8x128xf32, #tpu.memory_space<vmem>>, vector<1x8x128xf32>
    %9 = vector.shape_cast %8 : vector<1x8x128xf32> to vector<8x128xf32>
    %cst = arith.constant dense<0.000000e+00> : vector<128xf32>
    %10 = vector.multi_reduction <add>, %5, %cst [0] : vector<8x128xf32> to vector<128xf32>
    %11 = vector.shape_cast %10 : vector<128xf32> to vector<1x128xf32>
    %12 = arith.subf %1, %7 : vector<8x128xf32>
    %13 = arith.subf %3, %9 : vector<8x128xf32>
    %14 = arith.mulf %12, %12 : vector<8x128xf32>
    %15 = arith.mulf %13, %13 : vector<8x128xf32>
    %cst_10 = arith.constant 1.000000e+04 : f32
    %16 = vector.broadcast %cst_10 : f32 to vector<8x128xf32>
    %17 = arith.addf %14, %16 : vector<8x128xf32>
    %18 = tpu.reciprocal %17 {approx = true} : vector<8x128xf32> -> vector<8x128xf32>
    %19 = arith.mulf %17, %18 : vector<8x128xf32>
    %cst_11 = arith.constant 2.000000e+00 : f32
    %20 = vector.broadcast %cst_11 : f32 to vector<8x128xf32>
    %21 = arith.subf %20, %19 : vector<8x128xf32>
    %22 = arith.mulf %18, %21 : vector<8x128xf32>
    %cst_12 = arith.constant 1.000000e+04 : f32
    %23 = vector.broadcast %cst_12 : f32 to vector<8x128xf32>
    %24 = arith.addf %15, %23 : vector<8x128xf32>
    %25 = tpu.reciprocal %24 {approx = true} : vector<8x128xf32> -> vector<8x128xf32>
    %26 = arith.mulf %24, %25 : vector<8x128xf32>
    %cst_13 = arith.constant 2.000000e+00 : f32
    %27 = vector.broadcast %cst_13 : f32 to vector<8x128xf32>
    %28 = arith.subf %27, %26 : vector<8x128xf32>
    %29 = arith.mulf %25, %28 : vector<8x128xf32>
    %30 = arith.mulf %14, %22 : vector<8x128xf32>
    %31 = arith.mulf %15, %29 : vector<8x128xf32>
    %32 = arith.addf %30, %31 : vector<8x128xf32>
    %cst_14 = arith.constant 1.000000e+04 : f32
    %33 = vector.broadcast %cst_14 : f32 to vector<8x128xf32>
    %34 = arith.mulf %33, %32 : vector<8x128xf32>
    %35 = arith.mulf %5, %5 : vector<8x128xf32>
    %36 = arith.mulf %35, %34 : vector<8x128xf32>
    %cst_15 = arith.constant dense<0.000000e+00> : vector<128xf32>
    %37 = vector.multi_reduction <add>, %36, %cst_15 [0] : vector<8x128xf32> to vector<128xf32>
    %38 = vector.shape_cast %37 : vector<128xf32> to vector<1x128xf32>
    %39 = arith.mulf %11, %11 : vector<1x128xf32>
    %40 = arith.divf %38, %39 : vector<1x128xf32>
    %c0_16 = arith.constant 0 : index
    %c0_17 = arith.constant 0 : index
    %41 = vector.load %arg2[%c0_16, %c0_17] : memref<1x128xf32, #tpu.memory_space<vmem>>, vector<1x128xf32>
    tpu.vector_store %arg2[%c0_16, %c0_17], %40 {strides = array<i32>} : memref<1x128xf32, #tpu.memory_space<vmem>>, vector<1x128xf32>,
    return
  }
  func.func @transform_0(%arg0: i32) -> (i32, i32, i32) {
    %c0_i32 = arith.constant 0 : i32
    %c0_i32_0 = arith.constant 0 : i32
    %c0_i32_1 = arith.constant 0 : i32
    return %c0_i32, %c0_i32_0, %arg0 : i32, i32, i32
  }
  func.func @transform_1(%arg0: i32) -> (i32, i32) {
    %c0_i32 = arith.constant 0 : i32
    %c0_i32_0 = arith.constant 0 : i32
    return %c0_i32, %arg0 : i32, i32
  }
}

</mosaic_0001>

<llo_original>
// kernel: tpu_custom_call.1
$region0: #{tpu_custom_call.1}
  #allocation0 [shape = 'u32[]', space=smem, size = 0x4, offset = 0x4, fixed_abs, tag = 'smem constant byte address 0x4 - core index']
  #allocation1 [shape = 'u32[72,128]{1,0:T(1,128)}', space=vmem, size = 0x9000, scoped, tag = 'internal scratch']
  %s0 = inlined_call_operand.hbm [shape: f32[5,8,128], index: 0, kind: input, shape index: {}]
  %s1 = inlined_call_operand.hbm [shape: f32[1,128], index: 1, kind: output, shape index: {}]
  %s2 = sld [smem:[#allocation0]]
  $region18: #{tpu_custom_call.1} parent=0
    _
  %s4 = ssub.s32 1, %s2
  %s5 = scalar_select 0, %s4, %s2
  $region1: #{tpu_custom_call.1} parent=0
    #allocation2 [shape = 'u8[20480]{0}', space=vmem, size = 0x5000, scoped, tag = 'input window, operand 0, single buffered']
    #allocation3 [shape = 's32[1]{0}', space=sflag, size = 0x4, scoped, tag = 'scoped memory for tpu_custom_call.1']
    #allocation4 [shape = 's32[1]{0}', space=sflag, size = 0x4, scoped, tag = 'scoped memory for tpu_custom_call.1']
    #allocation5 [shape = 'u8[512]{0}', space=vmem, size = 0x400, scoped, tag = 'output window, operand 0, single buffered']
    %6 = vsyncpa [#allocation3], 0
    %7 = vsyncpa [#allocation4], 0
    // Predicated region
    $region2: #{tpu_custom_call.1} parent=1 // pred_check
      _
    $region3: #{tpu_custom_call.1} parent=1 // pred_check_branch
      %9 = sbr.rel (0) target = $region5
    $region4: #{tpu_custom_call.1} parent=1 // pred_region
      %11 = vsyncadd [#allocation3], 0
      %s12 = sshll.u32 %s0, 4
      %s13 = int_to_ptr.hbm [resolvable:$true] %s12
      %s14 = sshll.u32 [#allocation2], 4
      %s15 = int_to_ptr.vmem [resolvable:$true] %s14
      %20 = dma.hbm_to_vmem [thread:$0]  %s13, 640, %s15, [#allocation3], 128, 128, 8
    $region5: #{tpu_custom_call.1} parent=1 // pred_fallthru
      _
    // Predicated region
    $region6: #{tpu_custom_call.1} parent=1 // pred_check
      _
    $region7: #{tpu_custom_call.1} parent=1 // pred_check_branch
      %22 = sbr.rel (0) target = $region9
    $region8: #{tpu_custom_call.1} parent=1 // pred_region
      %24 = dma.done [#allocation3], 640
    $region9: #{tpu_custom_call.1} parent=1 // pred_fallthru
      _
    %v25 = vld [vmem:[#allocation2] sm:$0xff]
    %s26 = scalar_lea.vmem [#allocation2], 8
    %v27 = vld [vmem:[%s26] sm:$0xff]
    %s28 = scalar_lea.vmem [#allocation2], 16
    %v29 = vld [vmem:[%s28] sm:$0xff]
    %s30 = scalar_lea.vmem [#allocation2], 24
    %v31 = vld [vmem:[%s30] sm:$0xff]
    %s32 = scalar_lea.vmem [#allocation2], 32
    %v33 = vld [vmem:[%s32] sm:$0xff]
    %v34 = vrot.slane %v29, 4
    %v35 = vadd.f32 %v29, %v34
    %v36 = vrot.slane %v35, 2
    %v37 = vadd.f32 %v35, %v36
    %v38 = vrot.slane %v37, 1
    %v39 = vadd.f32 %v37, %v38
    %v40 = vsub.f32 %v25, %v31
    %v41 = vsub.f32 %v27, %v33
    %v42 = vmul.f32 %v40, %v40
    %v43 = vmul.f32 %v41, %v41
    %v44 = vadd.f32 %v42, 10000.0
    %v45 = vrcp.pop %v44
    %v46 = vmul.f32 %v44, %v45
    %v47 = vsub.f32 2.0, %v46
    %v48 = vmul.f32 %v45, %v47
    %v49 = vadd.f32 %v43, 10000.0
    %v50 = vrcp.pop %v49
    %v51 = vmul.f32 %v49, %v50
    %v52 = vsub.f32 2.0, %v51
    %v53 = vmul.f32 %v50, %v52
    %v54 = vmul.f32 %v42, %v48
    %v55 = vmul.f32 %v43, %v53
    %v56 = vadd.f32 %v54, %v55
    %v57 = vmul.f32 %v56, 10000.0
    %v58 = vmul.f32 %v29, %v29
    %v59 = vmul.f32 %v58, %v57
    %v60 = vrot.slane %v59, 4
    %v61 = vadd.f32 %v59, %v60
    %v62 = vrot.slane %v61, 2
    %v63 = vadd.f32 %v61, %v62
    %v64 = vrot.slane %v63, 1
    %v65 = vadd.f32 %v63, %v64
    %v66 = vmul.f32 %v39, %v39
    %v67 = vrcp.pop %v66
    %v68 = vmul.f32 %v66, %v67
    %v69 = vsub.f32 1.0, %v68
    %v70 = vmul.f32 %v67, %v69
    %v71 = vadd.f32 %v67, %v70
    %vm72 = vweird.f32 %v66
    %vm73 = vweird.f32 %v67
    %vm74 = vmor %vm72, %vm73
    %v75 = vsel %vm74, %v67, %v71
    %v76 = vand.u32 2147483647, %v66
    %vm77 = vcmp.eq.f32.partialorder %v76, 8.507059e+37
    %v78 = vand.u32 %v66, 2147483648
    %v79 = vor.u32 1.1754944e-38, %v78
    %v80 = vsel %vm77, %v79, %v75
    %v81 = vmul.f32 %v65, %v80
    %82 = vst [vmem:[#allocation5] sm:$0x1] %v81
    // Predicated region
    $region10: #{tpu_custom_call.1} parent=1 // pred_check
      _
    $region11: #{tpu_custom_call.1} parent=1 // pred_check_branch
      %84 = sbr.rel (0) target = $region13
    $region12: #{tpu_custom_call.1} parent=1 // pred_region
      %86 = vsyncadd [#allocation4], 0
      %s88 = sshll.u32 [#allocation5], 4
      %s89 = int_to_ptr.vmem [resolvable:$true] %s88
      %s90 = sshll.u32 %s1, 4
      %s91 = int_to_ptr.hbm [resolvable:$true] %s90
      %93 = dma.vmem_to_hbm [thread:$0]  %s89, 16, %s91, [#allocation4]
    $region13: #{tpu_custom_call.1} parent=1 // pred_fallthru
      _
    // Predicated region
    $region14: #{tpu_custom_call.1} parent=1 // pred_check
      _
    $region15: #{tpu_custom_call.1} parent=1 // pred_check_branch
      %95 = sbr.rel (0) target = $region17
    $region16: #{tpu_custom_call.1} parent=1 // pred_region
      %97 = dma.done [#allocation4], 16
    $region17: #{tpu_custom_call.1} parent=1 // pred_fallthru
      _
    %98 = vsyncpa [#allocation3], 1
    %99 = vsyncpa [#allocation4], 1

</llo_original>
